<compile_context>
chip_gen: v7x
topology: tpu7x:2x2x1
jax: 0.10.0
libtpu: 0.0.40
codegen_flags: <defaults>
</compile_context>

<pallas_src>
import jax
import jax.numpy as jnp
from jax.experimental import pallas as pl
from jax.experimental.pallas import tpu as pltpu

IN_FEATURES = 108
HIDDEN = 48
N_CLASSES = 1


def mlp_kernel(x_ref, w1t_ref, b1_ref, w2c_ref, b2_ref, o_ref):
    # x_ref:   [TB, 108] f32        w1t_ref: [108, 48] bf16
    # b1_ref:  [1, 48]   f32        w2c_ref: [48, 1]   bf16
    # b2_ref:  [1]       f32 (SMEM) o_ref:   [TB, 1]   f32
    x_bf = x_ref[...].astype(jnp.bfloat16)              # cast on VPU, hidden under DMA
    h = jnp.dot(x_bf, w1t_ref[...], preferred_element_type=jnp.float32)
    h = jnp.maximum(h + b1_ref[...], 0.0)                # bias + ReLU in f32
    # Layer 2 as an MXU matvec (MXU is ~idle); avoids XLU cross-lane reduce.
    out = jnp.dot(h.astype(jnp.bfloat16), w2c_ref[...],
                  preferred_element_type=jnp.float32)
    o_ref[...] = (out + b2_ref[0]).astype(o_ref.dtype)


def prepare_params(w1, b1, w2, b2, compute_dtype=jnp.bfloat16):
    """One-time parameter preprocessing (transpose / reshape / cast)."""
    return dict(
        w1t=jnp.asarray(w1).T.astype(compute_dtype),                     # [108, 48] bf16
        b1=jnp.asarray(b1).reshape(1, HIDDEN).astype(jnp.float32),       # [1, 48]   f32
        w2_col=jnp.asarray(w2).reshape(N_CLASSES, HIDDEN).T
                 .astype(compute_dtype),                                 # [48, 1]   bf16
        b2=jnp.asarray(b2).reshape(N_CLASSES).astype(jnp.float32),       # [1]       f32
    )


def ground_truth0_forward(x_nchw, params, *, tb_max=8192):
    """x_nchw: [B, C, H, W] with C*H*W == 108. Returns [B, N_CLASSES] f32."""
    B = x_nchw.shape[0]
    x_flat = x_nchw.reshape(B, -1)            # stays f32: no extra HBM pass
    assert x_flat.shape[1] == IN_FEATURES

    # Batch tile: multiple of 16 (bf16 sublane packing), capped at tb_max.
    # At TB=8192 the x tile is ~3.4 MiB f32 (double-buffered ~6.8 MiB) plus a
    # ~1.5 MiB f32 h intermediate and <64 KiB of weights: well under the
    # 32 MiB default scoped VMEM limit and v7x's 64 MiB physical VMEM.
    TB = int(min(tb_max, 16 * pl.cdiv(B, 16)))
    grid_b = pl.cdiv(B, TB)

    return pl.pallas_call(
        mlp_kernel,
        out_shape=jax.ShapeDtypeStruct((B, N_CLASSES), jnp.float32),
        grid=(grid_b,),
        in_specs=[
            pl.BlockSpec((TB, IN_FEATURES), lambda i: (i, 0)),          # x tiles (f32)
            pl.BlockSpec((IN_FEATURES, HIDDEN), lambda i: (0, 0)),      # W1^T (resident)
            pl.BlockSpec((1, HIDDEN), lambda i: (0, 0)),                # b1
            pl.BlockSpec((HIDDEN, N_CLASSES), lambda i: (0, 0)),        # W2 column
            pl.BlockSpec(memory_space=pltpu.MemorySpace.SMEM),          # b2 scalar
        ],
        out_specs=pl.BlockSpec((TB, N_CLASSES), lambda i: (i, 0)),
        compiler_params=pltpu.CompilerParams(
            dimension_semantics=("parallel",),   # v7x: shard batch tiles over 2 TCs
        ),
    )(x_flat, params["w1t"], params["b1"], params["w2_col"], params["b2"])


def reference_forward(x_nchw, w1, b1, w2, b2, cast=None):
    """Pure-JAX reference. cast=jnp.bfloat16 mimics the kernel's MXU quantization."""
    B = x_nchw.shape[0]
    x_flat = x_nchw.reshape(B, -1)
    w1t = w1.T
    w2t = w2.T
    if cast is not None:
        x_flat = x_flat.astype(cast)
        w1t = w1t.astype(cast)
    h = jnp.dot(x_flat, w1t, preferred_element_type=jnp.float32) + b1
    h = jnp.maximum(h, 0.0)
    if cast is not None:
        h = h.astype(cast)
        w2t = w2t.astype(cast)
    return jnp.dot(h, w2t, preferred_element_type=jnp.float32) + b2


if __name__ == "__main__":
    key = jax.random.PRNGKey(0)
    k_x, k_w1, k_b1, k_w2, k_b2 = jax.random.split(key, 5)

    # Small input whose flattened size is 108: [B=2, C=3, H=6, W=6]
    x = jax.random.normal(k_x, (2, 3, 6, 6), dtype=jnp.float32)

    # Deterministic parameter init (matches nn.Linear shapes).
    bound1 = 1.0 / jnp.sqrt(IN_FEATURES)
    w1 = jax.random.uniform(k_w1, (HIDDEN, IN_FEATURES), jnp.float32, -bound1, bound1)
    b1 = jax.random.uniform(k_b1, (HIDDEN,), jnp.float32, -bound1, bound1)
    bound2 = 1.0 / jnp.sqrt(HIDDEN)
    w2 = jax.random.uniform(k_w2, (N_CLASSES, HIDDEN), jnp.float32, -bound2, bound2)
    b2 = jax.random.uniform(k_b2, (N_CLASSES,), jnp.float32, -bound2, bound2)

    params = prepare_params(w1, b1, w2, b2)          # one-time prep (hoisted)
    fwd = jax.jit(ground_truth0_forward)

    y = jax.block_until_ready(fwd(x, params))
    assert y.shape == (2, N_CLASSES)

    # Tight check against a bf16-consistent reference (kernel correctness).
    y_ref_bf16 = reference_forward(x, w1, b1, w2, b2, cast=jnp.bfloat16)
    assert jnp.allclose(y, y_ref_bf16, atol=2e-3, rtol=2e-3)

    # Loose check against the full-f32 PyTorch-equivalent reference
    # (only deviation is bf16 quantization of the MXU inputs).
    y_ref_f32 = reference_forward(x, w1, b1, w2, b2, cast=None)
    assert jnp.allclose(y, y_ref_f32, atol=5e-2, rtol=5e-2)

    print("KERNEL_OK")
</pallas_src>

<mosaic_0001>
module attributes {stable_mosaic.version = 11 : i64} {
  func.func @mlp_kernel(%arg0: i32, %arg1: memref<16x108xf32, #tpu.memory_space<vmem>>, %arg2: memref<108x48xbf16, #tpu.memory_space<vmem>>, %arg3: memref<1x48xf32, #tpu.memory_space<vmem>>, %arg4: memref<48x1xbf16, #tpu.memory_space<vmem>>, %arg5: memref<1xf32, #tpu.memory_space<smem>>, %arg6: memref<16x1xf32, #tpu.memory_space<vmem>>) attributes {dimension_semantics = [#tpu.dimension_semantics<parallel>], iteration_bounds = array<i64: 1>, scalar_prefetch = 0 : i64, scratch_operands = 0 : i64, tpu.core_type = #tpu.core_type<tc>, window_params = [{transform_indices = @transform_0, window_bounds = array<i64: 16, 108>}, {pipeline_mode = #tpu.pipeline_mode<synchronous>, transform_indices = @transform_1, window_bounds = array<i64: 108, 48>}, {pipeline_mode = #tpu.pipeline_mode<synchronous>, transform_indices = @transform_2, window_bounds = array<i64: 1, 48>}, {pipeline_mode = #tpu.pipeline_mode<synchronous>, transform_indices = @transform_3, window_bounds = array<i64: 48, 1>}, {transform_indices = @transform_4, window_bounds = array<i64: 1>}, {transform_indices = @transform_5, window_bounds = array<i64: 16, 1>}]} {
    %c0 = arith.constant 0 : index
    %c0_0 = arith.constant 0 : index
    %0 = vector.load %arg1[%c0, %c0_0] : memref<16x108xf32, #tpu.memory_space<vmem>>, vector<16x108xf32>
    %1 = arith.truncf %0 : vector<16x108xf32> to vector<16x108xbf16>
    %c0_1 = arith.constant 0 : index
    %c0_2 = arith.constant 0 : index
    %2 = vector.load %arg2[%c0_1, %c0_2] : memref<108x48xbf16, #tpu.memory_space<vmem>>, vector<108x48xbf16>
    %cst = arith.constant dense<0.000000e+00> : vector<16x48xf32>
    %3 = tpu.matmul %1, %2, %cst {dimension_numbers = #tpu.dot_dimension_numbers<[1], [0], [0], [1], [0, 0, 1, 1], [], []>} : vector<16x108xbf16>, vector<108x48xbf16>, vector<16x48xf32> -> vector<16x48xf32>
    %c0_3 = arith.constant 0 : index
    %c0_4 = arith.constant 0 : index
    %4 = vector.load %arg3[%c0_3, %c0_4] : memref<1x48xf32, #tpu.memory_space<vmem>>, vector<1x48xf32>
    %5 = vector.broadcast %4 : vector<1x48xf32> to vector<16x48xf32>
    %6 = arith.addf %3, %5 : vector<16x48xf32>
    %cst_5 = arith.constant 0.000000e+00 : f32
    %7 = vector.broadcast %cst_5 : f32 to vector<16x48xf32>
    %8 = arith.maximumf %6, %7 : vector<16x48xf32>
    %9 = arith.truncf %8 : vector<16x48xf32> to vector<16x48xbf16>
    %c0_6 = arith.constant 0 : index
    %c0_7 = arith.constant 0 : index
    %10 = vector.load %arg4[%c0_6, %c0_7] : memref<48x1xbf16, #tpu.memory_space<vmem>>, vector<48x1xbf16>
    %cst_8 = arith.constant dense<0.000000e+00> : vector<16x1xf32>
    %11 = tpu.matmul %9, %10, %cst_8 {dimension_numbers = #tpu.dot_dimension_numbers<[1], [0], [0], [1], [0, 0, 1, 1], [], []>} : vector<16x48xbf16>, vector<48x1xbf16>, vector<16x1xf32> -> vector<16x1xf32>
    %c0_9 = arith.constant 0 : index
    %12 = memref.load %arg5[%c0_9] : memref<1xf32, #tpu.memory_space<smem>>
    %13 = vector.broadcast %12 : f32 to vector<16x1xf32>
    %14 = arith.addf %11, %13 : vector<16x1xf32>
    %c0_10 = arith.constant 0 : index
    %c0_11 = arith.constant 0 : index
    %15 = vector.load %arg6[%c0_10, %c0_11] : memref<16x1xf32, #tpu.memory_space<vmem>>, vector<16x1xf32>
    tpu.vector_store %arg6[%c0_10, %c0_11], %14 {strides = array<i32>} : memref<16x1xf32, #tpu.memory_space<vmem>>, vector<16x1xf32>,
    return
  }
  func.func @transform_0(%arg0: i32) -> (i32, i32) {
    %c0_i32 = arith.constant 0 : i32
    %c0_i32_0 = arith.constant 0 : i32
    return %arg0, %c0_i32 : i32, i32
  }
  func.func @transform_1(%arg0: i32) -> (i32, i32) {
    %c0_i32 = arith.constant 0 : i32
    %c0_i32_0 = arith.constant 0 : i32
    %c0_i32_1 = arith.constant 0 : i32
    return %c0_i32, %c0_i32_0 : i32, i32
  }
  func.func @transform_2(%arg0: i32) -> (i32, i32) {
    %c0_i32 = arith.constant 0 : i32
    %c0_i32_0 = arith.constant 0 : i32
    %c0_i32_1 = arith.constant 0 : i32
    return %c0_i32, %c0_i32_0 : i32, i32
  }
  func.func @transform_3(%arg0: i32) -> (i32, i32) {
    %c0_i32 = arith.constant 0 : i32
    %c0_i32_0 = arith.constant 0 : i32
    %c0_i32_1 = arith.constant 0 : i32
    return %c0_i32, %c0_i32_0 : i32, i32
  }
  func.func @transform_4(%arg0: i32) -> i32 {
    %c0_i32 = arith.constant 0 : i32
    %c0_i32_0 = arith.constant 0 : i32
    return %c0_i32 : i32
  }
  func.func @transform_5(%arg0: i32) -> (i32, i32) {
    %c0_i32 = arith.constant 0 : i32
    %c0_i32_0 = arith.constant 0 : i32
    return %arg0, %c0_i32 : i32, i32
  }
}

</mosaic_0001>

<llo_original>
// kernel: ground_truth0_forward.1
$region0: #{ground_truth0_forward.1}
  #allocation0 [shape = 'u32[]', space=smem, size = 0x4, offset = 0x4, fixed_abs, tag = 'smem constant byte address 0x4 - core index']
  #allocation1 [shape = 'u32[144,128]{1,0:T(1,128)}', space=vmem, size = 0x12000, scoped, tag = 'internal scratch']
  #allocation2 [shape = 'f32[1]{0:T(128)S(6)}', space=smem, size = 0x200, scoped, tag = 'scoped memory for ground_truth0_forward.1']
  %s0 = inlined_call_operand.vmem [shape: f32[2,108], index: 0, kind: input, shape index: {}]
  %s1 = inlined_call_operand.vmem [shape: bf16[108,48], index: 1, kind: input, shape index: {}]
  %s2 = inlined_call_operand.vmem [shape: f32[1,48], index: 2, kind: input, shape index: {}]
  %s3 = inlined_call_operand.vmem [shape: bf16[48,1], index: 3, kind: input, shape index: {}]
  %s4 = inlined_call_operand.<no memory space> [shape: f32[1], index: 4, kind: input, shape index: {}]
  %s5 = inlined_call_operand.vmem [shape: f32[2,1], index: 5, kind: output, shape index: {}]
  %s6 = sld [smem:[#allocation0]]
  $region60: #{ground_truth0_forward.1} parent=0
    _
  %s8 = ssub.s32 1, %s6
  %s9 = scalar_select 0, %s8, %s6
  %10 = sst [smem:[#allocation2]] %s4
  $region1: #{ground_truth0_forward.1} parent=0
    #allocation3 [shape = 'u8[8192]{0}', space=vmem, size = 0x2000, scoped, tag = 'output window, operand 0, single buffered']
    // Predicated region
    $region2: #{ground_truth0_forward.1} parent=1 // pred_check
      _
    $region3: #{ground_truth0_forward.1} parent=1 // pred_check_branch
      %12 = sbr.rel (0) target = $region5
    $region4: #{ground_truth0_forward.1} parent=1 // pred_region
      _
    $region5: #{ground_truth0_forward.1} parent=1 // pred_fallthru
      _
    // Predicated region
    $region6: #{ground_truth0_forward.1} parent=1 // pred_check
      _
    $region7: #{ground_truth0_forward.1} parent=1 // pred_check_branch
      %14 = sbr.rel (0) target = $region9
    $region8: #{ground_truth0_forward.1} parent=1 // pred_region
      _
    $region9: #{ground_truth0_forward.1} parent=1 // pred_fallthru
      _
    // Predicated region
    $region10: #{ground_truth0_forward.1} parent=1 // pred_check
      _
    $region11: #{ground_truth0_forward.1} parent=1 // pred_check_branch
      %16 = sbr.rel (0) target = $region13
    $region12: #{ground_truth0_forward.1} parent=1 // pred_region
      _
    $region13: #{ground_truth0_forward.1} parent=1 // pred_fallthru
      _
    // Predicated region
    $region14: #{ground_truth0_forward.1} parent=1 // pred_check
      _
    $region15: #{ground_truth0_forward.1} parent=1 // pred_check_branch
      %18 = sbr.rel (0) target = $region17
    $region16: #{ground_truth0_forward.1} parent=1 // pred_region
      _
    $region17: #{ground_truth0_forward.1} parent=1 // pred_fallthru
      _
    // Predicated region
    $region18: #{ground_truth0_forward.1} parent=1 // pred_check
      _
    $region19: #{ground_truth0_forward.1} parent=1 // pred_check_branch
      %20 = sbr.rel (0) target = $region21
    $region20: #{ground_truth0_forward.1} parent=1 // pred_region
      _
    $region21: #{ground_truth0_forward.1} parent=1 // pred_fallthru
      _
    %v22 = vld [vmem:[%s0] sm:$0xff]
    %v23 = vld [vmem:[%s0 + $0x8] sm:$0xff]
    %v24 = vpack.c.bf16 %v23, %v22
    %v25 = vld [vmem:[%s1] sm:$0xf]
    %v26 = vld [vmem:[%s1 + $0x4] sm:$0xf]
    %v27 = vld [vmem:[%s1 + $0x8] sm:$0xf]
    %v28 = vld [vmem:[%s1 + $0xc] sm:$0xf]
    %v29 = vld [vmem:[%s1 + $0x10] sm:$0xf]
    %v30 = vld [vmem:[%s1 + $0x14] sm:$0xf]
    %v31 = vld [vmem:[%s1 + $0x18] sm:$0xf]
    %v32 = vld [vmem:[%s1 + $0x1c] sm:$0xf]
    %v33 = vld [vmem:[%s1 + $0x20] sm:$0xf]
    %v34 = vld [vmem:[%s1 + $0x24] sm:$0xf]
    %v35 = vld [vmem:[%s1 + $0x28] sm:$0xf]
    %v36 = vld [vmem:[%s1 + $0x2c] sm:$0xf]
    %v37 = vld [vmem:[%s1 + $0x30] sm:$0xf]
    %v38 = vld [vmem:[%s1 + $0x34] sm:$0x3]
    %v39 = vld [vmem:[%s2] sm:$0x1]
    %v41 = vlaneseq
    %v42 = vshrl.u32 %v41, 7
    %v43 = vsub.s32 0, %v42
    %v44 = vrot.slane %v39, %v43
    %v60 = vunpack.c.l.b16 %v25
    %v61 = vunpack.c.l.b16 %v26
    %v62 = vunpack.c.l.b16 %v27
    %v63 = vunpack.c.l.b16 %v28
    %v64 = vunpack.c.l.b16 %v29
    %v65 = vunpack.c.l.b16 %v30
    %v66 = vunpack.c.l.b16 %v31
    %v67 = vunpack.c.l.b16 %v32
    %v68 = vunpack.c.l.b16 %v33
    %v69 = vunpack.c.l.b16 %v34
    %v70 = vunpack.c.l.b16 %v35
    %v71 = vunpack.c.l.b16 %v36
    %v72 = vunpack.c.l.b16 %v37
    %v73 = vunpack.c.l.b16 %v38
    %v74 = vpack.c.b16 %v61, %v60
    %v75 = vpack.c.b16 %v63, %v62
    %v76 = vpack.c.b16 %v65, %v64
    %v77 = vpack.c.b16 %v67, %v66
    %v78 = vpack.c.b16 %v69, %v68
    %v79 = vpack.c.b16 %v71, %v70
    %v80 = vpack.c.b16 %v73, %v72
    %vm87 = vcmask 883712
    %v89 = vsel %vm87, %v24, 0
    %vm91 = vcmask 1045504
    %v93 = vsel %vm91, %v80, 0
    %95 = vmatprep.subr.bf16.mxu0 0
    %96 = vmatpush1.bf16.msra.mxu0 %v74
    %97 = vmatprep.subr.bf16.mxu0 0
    %98 = vmatpush1.bf16.msra.mxu0 %v75
    %99 = vmatprep.subr.bf16.mxu0 0
    %100 = vmatpush1.bf16.msra.mxu0 %v76
    %101 = vmatprep.subr.bf16.mxu0 0
    %102 = vmatpush1.bf16.msra.mxu0 %v77
    %103 = vmatprep.subr.bf16.mxu0 0
    %104 = vmatpush1.bf16.msra.mxu0 %v78
    %105 = vmatprep.subr.bf16.mxu0 0
    %106 = vmatpush1.bf16.msra.mxu0 %v79
    %107 = vmatprep.subr.bf16.mxu0 0
    %108 = vmatpush1.bf16.msra.mxu0 %v93
    %109 = vmatprep.subr.bf16.mxu0 0
    %110 = vmatpush1.bf16.msra.mxu0 0
    %111 = vmatprep.subr.bf16.mxu0 0
    %112 = vmatpush1.bf16.msra.mxu0 0
    %113 = vmatprep.subr.bf16.mxu0 0
    %114 = vmatpush1.bf16.msra.mxu0 0
    %115 = vmatprep.subr.bf16.mxu0 0
    %116 = vmatpush1.bf16.msra.mxu0 0
    %117 = vmatprep.subr.bf16.mxu0 0
    %118 = vmatpush1.bf16.msra.mxu0 0
    %119 = vmatprep.subr.bf16.mxu0 0
    %120 = vmatpush1.bf16.msra.mxu0 0
    %121 = vmatprep.subr.bf16.mxu0 0
    %122 = vmatpush1.bf16.msra.mxu0 0
    %123 = vmatprep.subr.bf16.mxu0 0
    %124 = vmatpush1.bf16.msra.mxu0 0
    %125 = vmatprep.subr.bf16.mxu0 0
    %126 = vmatpush1.bf16.msra.mxu0 0
    %127 = vmatprep.mubr.bf16.mxu0 0
    %128 = vmatmul.mubr.bf16.gmra.mrb[0].mxu0 %v89
    %v129 = vpop.f32.mrb[0].mxu0
    %v130 = vadd.f32 %v44, %v129
    %v131 = vpop.f32.mrb[0].mxu0
    %v132 = vpop.f32.mrb[0].mxu0
    %v133 = vadd.f32 %v44, %v132
    %v134 = vpop.f32.mrb[0].mxu0
    %135 = vdwg.mxu0
    %v136 = vmax.f32 %v130, 0.0
    %v137 = vmax.f32 %v133, 0.0
    %v138 = vpack.c.bf16 %v137, %v136
    %v139 = vld [vmem:[%s3] sm:$0xf]
    %v140 = vld [vmem:[%s3 + $0x4] sm:$0xf]
    %v141 = vld [vmem:[%s3 + $0x8] sm:$0xf]
    %v142 = vld [vmem:[%s3 + $0xc] sm:$0xf]
    %v143 = vld [vmem:[%s3 + $0x10] sm:$0xf]
    %v144 = vld [vmem:[%s3 + $0x14] sm:$0xf]
    %s145 = sld [smem:[#allocation2]]
    %v146 = vstv %s145
    %v153 = vunpack.c.l.b16 %v139
    %v154 = vunpack.c.l.b16 %v140
    %v155 = vunpack.c.l.b16 %v141
    %v156 = vunpack.c.l.b16 %v142
    %v157 = vunpack.c.l.b16 %v143
    %v158 = vunpack.c.l.b16 %v144
    %v159 = vpack.c.b16 %v154, %v153
    %v160 = vpack.c.b16 %v156, %v155
    %v161 = vpack.c.b16 %v158, %v157
    %vm165 = vcmask 392192
    %v167 = vsel %vm165, %v138, 0
    %169 = vmatprep.subr.bf16.mxu0 0
    %170 = vmatpush1.bf16.msra.mxu0 %v159
    %171 = vmatprep.subr.bf16.mxu0 0
    %172 = vmatpush1.bf16.msra.mxu0 %v160
    %173 = vmatprep.subr.bf16.mxu0 0
    %174 = vmatpush1.bf16.msra.mxu0 %v161
    %175 = vmatprep.subr.bf16.mxu0 0
    %176 = vmatpush1.bf16.msra.mxu0 0
    %177 = vmatprep.subr.bf16.mxu0 0
    %178 = vmatpush1.bf16.msra.mxu0 0
    %179 = vmatprep.subr.bf16.mxu0 0
    %180 = vmatpush1.bf16.msra.mxu0 0
    %181 = vmatprep.subr.bf16.mxu0 0
    %182 = vmatpush1.bf16.msra.mxu0 0
    %183 = vmatprep.subr.bf16.mxu0 0
    %184 = vmatpush1.bf16.msra.mxu0 0
    %185 = vmatprep.subr.bf16.mxu0 0
    %186 = vmatpush1.bf16.msra.mxu0 0
    %187 = vmatprep.subr.bf16.mxu0 0
    %188 = vmatpush1.bf16.msra.mxu0 0
    %189 = vmatprep.subr.bf16.mxu0 0
    %190 = vmatpush1.bf16.msra.mxu0 0
    %191 = vmatprep.subr.bf16.mxu0 0
    %192 = vmatpush1.bf16.msra.mxu0 0
    %193 = vmatprep.subr.bf16.mxu0 0
    %194 = vmatpush1.bf16.msra.mxu0 0
    %195 = vmatprep.subr.bf16.mxu0 0
    %196 = vmatpush1.bf16.msra.mxu0 0
    %197 = vmatprep.subr.bf16.mxu0 0
    %198 = vmatpush1.bf16.msra.mxu0 0
    %199 = vmatprep.subr.bf16.mxu0 0
    %200 = vmatpush1.bf16.msra.mxu0 0
    %201 = vmatprep.mubr.bf16.mxu0 0
    %202 = vmatmul.mubr.bf16.gmra.mrb[0].mxu0 %v167
    %v203 = vpop.f32.mrb[0].mxu0
    %v204 = vadd.f32 %v146, %v203
    %v205 = vpop.f32.mrb[0].mxu0
    %v206 = vpop.f32.mrb[0].mxu0
    %v207 = vadd.f32 %v146, %v206
    %v208 = vpop.f32.mrb[0].mxu0
    %209 = vdwg.mxu0
    %vm210 = vcmask 7168
    %211 = vst.msk [vmem:[#allocation3] sm:$0xff] %vm210, %v204
    %212 = vst.msk [vmem:[#allocation3 + $0x8] sm:$0xff] %vm210, %v207
    // Predicated region
    $region22: #{ground_truth0_forward.1} parent=1 // pred_check
      _
    $region23: #{ground_truth0_forward.1} parent=1 // pred_check_branch
      %214 = sbr.rel (0) target = $region25
    $region24: #{ground_truth0_forward.1} parent=1 // pred_region
      // Predicated region
      $region26: #{ground_truth0_forward.1} parent=24 // pred_check
        _
      $region27: #{ground_truth0_forward.1} parent=24 // pred_check_branch
        %216 = sbr.rel (0) target = $region29
      $region28: #{ground_truth0_forward.1} parent=24 // pred_region
        // Predicated region
        $region30: #{ground_truth0_forward.1} parent=28 // pred_check
          _
        $region31: #{ground_truth0_forward.1} parent=28 // pred_check_branch
          %218 = sbr.rel target = $region33
        $region32: #{ground_truth0_forward.1} parent=28 // pred_region
          // Predicated region
          $region45: #{ground_truth0_forward.1} parent=32 // pred_check
            _
          $region46: #{ground_truth0_forward.1} parent=32 // pred_check_branch
            %233 = sbr.rel (0) target = $region48
          $region47: #{ground_truth0_forward.1} parent=32 // pred_region
            loop: start=0, step=1, limit=1
            $region49: #{ground_truth0_forward.1} parent=47 // loop_pre_header
              _
            $region50: #{ground_truth0_forward.1} parent=47 // loop_header
              %s236 = sphi 0, %s240
              %p237 = scmp.ge.s32.totalorder %s236, 1
              %s241 = sphi [#allocation3], [#allocation3]
              %s242 = sphi %s5, %s5
            $region51: #{ground_truth0_forward.1} parent=47 // loop_header_branch
              %239 = sbr.rel (%p237) target = $region55
            $region52: #{ground_truth0_forward.1} parent=47 // loop_body
              %v243 = vld [vmem:[%s241] sm:$0x3]
              %244 = vst [vmem:[%s242] sm:$0x3] %v243
            $region53: #{ground_truth0_forward.1} parent=47 // loop_footer
              %s240 = sadd.s32 1, %s236
            $region54: #{ground_truth0_forward.1} parent=47 // loop_footer_branch
              %235 = sbr.rel target = $region50
            $region55: #{ground_truth0_forward.1} parent=47 // loop_exit
              _
          $region48: #{ground_truth0_forward.1} parent=32 // pred_fallthru
            _
        $region33: #{ground_truth0_forward.1} parent=28 // pred_fallthru
          _
        // Predicated region
        $region34: #{ground_truth0_forward.1} parent=28 // pred_check
          _
        $region35: #{ground_truth0_forward.1} parent=28 // pred_check_branch
          %220 = sbr.rel (0) target = $region37
        $region36: #{ground_truth0_forward.1} parent=28 // pred_region
          loop: start=0, step=1, limit=1
          $region38: #{ground_truth0_forward.1} parent=36 // loop_pre_header
            _
          $region39: #{ground_truth0_forward.1} parent=36 // loop_header
            %s223 = sphi 0, %s227
            %p224 = scmp.ge.s32.totalorder %s223, 1
            %s228 = sphi [#allocation3], [#allocation3]
            %s229 = sphi %s5, %s5
          $region40: #{ground_truth0_forward.1} parent=36 // loop_header_branch
            %226 = sbr.rel (%p224) target = $region44
          $region41: #{ground_truth0_forward.1} parent=36 // loop_body
            %v230 = vld [vmem:[%s228] sm:$0x3]
            %231 = vst [vmem:[%s229] sm:$0x3] %v230
          $region42: #{ground_truth0_forward.1} parent=36 // loop_footer
            %s227 = sadd.s32 1, %s223
          $region43: #{ground_truth0_forward.1} parent=36 // loop_footer_branch
            %222 = sbr.rel target = $region39
          $region44: #{ground_truth0_forward.1} parent=36 // loop_exit
            _
        $region37: #{ground_truth0_forward.1} parent=28 // pred_fallthru
          _
      $region29: #{ground_truth0_forward.1} parent=24 // pred_fallthru
        _
      %245 = vnop
    $region25: #{ground_truth0_forward.1} parent=1 // pred_fallthru
      _
    // Predicated region
    $region56: #{ground_truth0_forward.1} parent=1 // pred_check
      _
    $region57: #{ground_truth0_forward.1} parent=1 // pred_check_branch
      %247 = sbr.rel (0) target = $region59
    $region58: #{ground_truth0_forward.1} parent=1 // pred_region
      _
    $region59: #{ground_truth0_forward.1} parent=1 // pred_fallthru
      _

</llo_original>
